<compile_context>
chip_gen: v6e
topology: v6e:2x2x1
jax: 0.10.0
libtpu: 0.0.40
codegen_flags: <defaults>
</compile_context>

<pallas_src>
import numpy as np
import jax
import jax.numpy as jnp
from jax import lax
from jax.experimental import pallas as pl
from jax.experimental.pallas import tpu as pltpu


# ----------------------------------------------------------------------------
# small helpers
# ----------------------------------------------------------------------------
def _round_up(x, m):
    return (x + m - 1) // m * m


def _cdiv(a, b):
    return (a + b - 1) // b


def _tpu_vmem_capacity_bytes():
    """VMEM capacity (bytes); conservative 64 MiB fallback (v7x per-core size)."""
    try:
        info = pltpu.get_tpu_info()
        cap = int(getattr(info, "vmem_capacity_bytes", 0) or 0)
        if cap > 0:
            return cap
    except Exception:
        pass
    return 64 * 1024 * 1024


def _is_v5():
    try:
        return "v5" in jax.devices()[0].device_kind.lower()
    except Exception:
        return False


def _pick_tb(b, is_v5):
    """Batch tile: fill the MXU M dim (128 on v5e, 256 on v6e/v7x) for large B,
    and guarantee >= 2 batch tiles on medium B so v7x's two TensorCores both work."""
    if b <= 8:
        return b                      # tiny batch: single tile (block dim == array dim)
    prefer = 128 if is_v5 else 256
    b8 = _round_up(b, 8)
    if b8 <= 2 * prefer:
        return max(8, _round_up(_cdiv(b8, 2), 8))   # >= 2 tiles, no over-padding
    return prefer


def _fused_vmem_bytes(tb, dp, x_isz, out_isz):
    return (2 * tb * dp * x_isz            # x block (double-buffered)
            + 2 * 2 * dp * dp * 2          # W_in^T + W_out^T (bf16, 2 buffers each)
            + 2 * 2 * dp * 4               # biases
            + 2 * tb * dp * out_isz        # output block
            + 4 * tb * dp * 4)             # headroom for in-kernel f32/bf16 temporaries


def _general_vmem_bytes(tb, tk, dp, resident_w, x_isz, out_isz):
    v = 2 * tb * tk * x_isz                # x tile (double-buffered)
    if resident_w:
        v += 2 * 2 * dp * dp * 2           # both weights resident (2 buffers each)
    else:
        v += 2 * 2 * tk * dp * 2           # streamed (tk, dp) slices of both weights
    v += 2 * 2 * dp * 4                    # biases
    v += 2 * tb * dp * out_isz             # output block
    v += tb * dp * 4 + tb * dp * 2         # f32 accumulator + bf16 modulated-h scratch
    return v


def _fit_general(tb_pref, dp, budget, x_isz, out_isz, tk_override, force_streamed):
    """Pick (resident_w, tb, tk) for the phased path.  Prefer weight residency
    (biggest HBM-traffic lever), then the largest batch/contraction tiles."""
    tks = [t for t in (512, 256, 128) if t <= dp and dp % t == 0] or [dp]
    if tk_override is not None and tk_override <= dp and dp % tk_override == 0:
        tks = [tk_override]
    tbs = []
    for cand in (tb_pref, 128, 64, 32, 8):
        if cand <= tb_pref and cand not in tbs:
            tbs.append(cand)
    residency = (False,) if force_streamed else (True, False)
    for resident in residency:
        for tb in tbs:
            for tk in tks:
                if _general_vmem_bytes(tb, tk, dp, resident, x_isz, out_isz) <= budget:
                    return resident, tb, tk
    return False, tbs[-1], tks[-1]


# ----------------------------------------------------------------------------
# kernels
# ----------------------------------------------------------------------------
def _make_fused_kernel(tb, dp):
    """Small-problem fast path: both matmuls + wave modulation in one grid step.
    Weights/biases are VMEM-resident (constant block index)."""

    def kernel(wave_ref, x_ref, w_in_ref, b_in_ref, w_out_ref, b_out_ref, o_ref):
        xb = x_ref[...].astype(jnp.bfloat16)            # per-tile cast (VPU, hides under MXU)
        h = jnp.dot(xb, w_in_ref[...], preferred_element_type=jnp.float32)
        h = h + b_in_ref[...].astype(jnp.float32)
        mod = (h * wave_ref[0, 0]).astype(jnp.bfloat16)  # bf16 MXU operand; f32 h is source of truth
        out = jnp.dot(mod, w_out_ref[...], preferred_element_type=jnp.float32)
        out = out + b_out_ref[...].astype(jnp.float32)
        o_ref[...] = out.astype(o_ref.dtype)

    return kernel


def _make_general_kernel(tb, tk, dp, resident_w):
    """Phased path.  Grid = (nb, 2, nk): batch tile ("parallel"), phase, K tile (last).
      phase 0: h   = x @ W_in^T  + b_in     (bias folded into the f32 accumulator)
      phase 1: out = bf16(h*wave) @ W_out^T + b_out
    The modulated hidden never round-trips HBM (bf16 VMEM scratch)."""

    def kernel(wave_ref, x_ref, w_in_ref, b_in_ref, w_out_ref, b_out_ref,
               o_ref, acc_ref, h_ref):
        p = pl.program_id(1)
        k = pl.program_id(2)
        nk = pl.num_programs(2)

        # -- init: fold this phase's bias into the f32 accumulator ------------
        @pl.when((p == 0) & (k == 0))
        def _():
            acc_ref[...] = jnp.broadcast_to(b_in_ref[...], (tb, dp)).astype(jnp.float32)

        @pl.when((p == 1) & (k == 0))
        def _():
            acc_ref[...] = jnp.broadcast_to(b_out_ref[...], (tb, dp)).astype(jnp.float32)

        # -- phase 0: accumulate one K slice of x @ W_in^T ---------------------
        @pl.when(p == 0)
        def _():
            xb = x_ref[...].astype(jnp.bfloat16)          # per-tile cast in-kernel
            if resident_w:
                start = pl.multiple_of(k * tk, tk)
                w0 = w_in_ref[pl.ds(start, tk), :]        # slice the VMEM-resident weight
            else:
                w0 = w_in_ref[...]
            acc_ref[...] += jnp.dot(xb, w0, preferred_element_type=jnp.float32)

        # -- phase 1: accumulate one K slice of bf16(h*wave) @ W_out^T ---------
        @pl.when(p == 1)
        def _():
            start = pl.multiple_of(k * tk, tk)
            mod = h_ref[:, pl.ds(start, tk)]              # bf16 (tb, tk), VMEM only
            if resident_w:
                w1 = w_out_ref[pl.ds(start, tk), :]
            else:
                w1 = w_out_ref[...]
            acc_ref[...] += jnp.dot(mod, w1, preferred_element_type=jnp.float32)

        # -- finalize phase 0: modulated hidden stays in VMEM ------------------
        @pl.when((p == 0) & (k == nk - 1))
        def _():
            h_ref[...] = (acc_ref[...] * wave_ref[0, 0]).astype(h_ref.dtype)

        # -- finalize phase 1: write the output tile (lane-dense, width dp) ----
        @pl.when((p == 1) & (k == nk - 1))
        def _():
            o_ref[...] = acc_ref[...].astype(o_ref.dtype)

    return kernel


# ----------------------------------------------------------------------------
# parameter packing (one-time, at init)
# ----------------------------------------------------------------------------
def prepare_wave_neuron_params(w_in, b_in, w_out, b_out):
    """Transpose (PyTorch [out,in] -> [in,out]), zero-pad to a lane-dense multiple
    of 128 and cast weights to bf16 ONCE.  Separate arrays per layer so the
    resident / streamed BlockSpecs can address each weight independently."""
    d = int(w_in.shape[0])
    dp = _round_up(d, 128)

    def pad_w(w):
        wt = jnp.zeros((dp, dp), jnp.float32).at[:d, :d].set(jnp.asarray(w, jnp.float32).T)
        return wt.astype(jnp.bfloat16)

    def pad_b(bb):
        return jnp.zeros((1, dp), jnp.float32).at[0, :d].set(jnp.asarray(bb, jnp.float32))

    return pad_w(w_in), pad_b(b_in), pad_w(w_out), pad_b(b_out), d, dp


# ----------------------------------------------------------------------------
# forward
# ----------------------------------------------------------------------------
def wave_neuron_forward(x, wave, w_in_p, b_in_p, w_out_p, b_out_p, d, dp, *,
                        out_dtype=jnp.float32,
                        _force_general=False, _force_streamed_weights=False, _tk=None):
    """x: [B, d] (f32 or bf16, unpadded).  wave: scalar.
    w_*_p: (dp, dp) bf16 padded W^T;  b_*_p: (1, dp) f32 padded bias."""
    b, dx = x.shape
    assert dx == d

    cap = _tpu_vmem_capacity_bytes()
    budget = int(0.70 * cap)                 # leave headroom for compiler scratch
    is_v5 = _is_v5()
    out_isz = np.dtype(out_dtype).itemsize

    # x is passed through untouched when d is lane-aligned; only a ragged feature
    # dim (d % 128 != 0, e.g. the demo D=32) pays one padded bf16 copy.
    # The batch dim is never padded (Pallas masks the ragged last batch tile).
    if d != dp:
        x_eff = jnp.zeros((b, dp), jnp.bfloat16).at[:, :d].set(x.astype(jnp.bfloat16))
    else:
        x_eff = x
    x_isz = x_eff.dtype.itemsize

    tb = _pick_tb(b, is_v5)
    wave_s = jnp.asarray(wave, jnp.float32).reshape(1, 1)
    smem_spec = pl.BlockSpec(memory_space=pltpu.MemorySpace.SMEM)

    # ---- small-problem fast path: one fused grid step per batch tile --------
    fused_bytes = _fused_vmem_bytes(tb, dp, x_isz, out_isz)
    if (not _force_general) and dp <= 2048 and fused_bytes <= budget:
        nb = _cdiv(b, tb)
        vmem_limit = int(min(max(fused_bytes + (2 << 20), 16 << 20),
                             max(budget, fused_bytes + (1 << 20))))
        out_p = pl.pallas_call(
            _make_fused_kernel(tb, dp),
            out_shape=jax.ShapeDtypeStruct((b, dp), out_dtype),
            grid=(nb,),
            in_specs=[
                smem_spec,                                    # wave (1,1) scalar
                pl.BlockSpec((tb, dp), lambda i: (i, 0)),     # x tile
                pl.BlockSpec((dp, dp), lambda i: (0, 0)),     # W_in^T  (VMEM-resident)
                pl.BlockSpec((1, dp), lambda i: (0, 0)),      # b_in
                pl.BlockSpec((dp, dp), lambda i: (0, 0)),     # W_out^T (VMEM-resident)
                pl.BlockSpec((1, dp), lambda i: (0, 0)),      # b_out
            ],
            out_specs=pl.BlockSpec((tb, dp), lambda i: (i, 0)),
            compiler_params=pltpu.CompilerParams(
                dimension_semantics=("parallel",),
                vmem_limit_bytes=vmem_limit),
            cost_estimate=pl.CostEstimate(
                flops=4 * b * dp * dp, transcendentals=0,
                bytes_accessed=(b * dp * x_isz + 2 * dp * dp * 2 + 2 * dp * 4
                                + b * dp * out_isz)),
        )(wave_s, x_eff, w_in_p, b_in_p, w_out_p, b_out_p)
        return out_p if d == dp else out_p[:, :d]

    # ---- general phased / K-tiled path ---------------------------------------
    resident_w, tb, tk = _fit_general(tb, dp, budget, x_isz, out_isz,
                                      _tk, _force_streamed_weights)
    nb = _cdiv(b, tb)
    nk = dp // tk
    nk_last = nk - 1
    needed = _general_vmem_bytes(tb, tk, dp, resident_w, x_isz, out_isz)
    vmem_limit = int(min(max(needed + (2 << 20), 16 << 20),
                         max(budget, needed + (1 << 20))))

    if resident_w:
        # full weights resident in VMEM: constant block index -> fetched once ever
        w_in_spec = pl.BlockSpec((dp, dp), lambda i, p, k: (0, 0))
        w_out_spec = pl.BlockSpec((dp, dp), lambda i, p, k: (0, 0))
        w_bytes = 2 * dp * dp * 2
    else:
        # streamed (tk, dp) slices; pin each weight's index during the phase that
        # does not use it so consecutive identical block indices skip the DMA
        w_in_spec = pl.BlockSpec((tk, dp),
                                 lambda i, p, k: (jnp.where(p == 0, k, nk_last), 0))
        w_out_spec = pl.BlockSpec((tk, dp),
                                  lambda i, p, k: (jnp.where(p == 1, k, 0), 0))
        w_bytes = nb * 2 * dp * dp * 2

    out_p = pl.pallas_call(
        _make_general_kernel(tb, tk, dp, resident_w),
        out_shape=jax.ShapeDtypeStruct((b, dp), out_dtype),
        grid=(nb, 2, nk),
        in_specs=[
            smem_spec,                                                        # wave
            # x is only read in phase 0; pin its block index during phase 1 so the
            # identical consecutive index skips the (previously redundant) DMA.
            pl.BlockSpec((tb, tk),
                         lambda i, p, k: (i, jnp.where(p == 0, k, nk_last))),  # x tile
            w_in_spec,
            pl.BlockSpec((1, dp), lambda i, p, k: (0, 0)),                    # b_in
            w_out_spec,
            pl.BlockSpec((1, dp), lambda i, p, k: (0, 0)),                    # b_out
        ],
        out_specs=pl.BlockSpec((tb, dp), lambda i, p, k: (i, 0)),
        scratch_shapes=[
            pltpu.VMEM((tb, dp), jnp.float32),    # f32 accumulator (source of truth)
            pltpu.VMEM((tb, dp), jnp.bfloat16),   # modulated hidden (never hits HBM)
        ],
        compiler_params=pltpu.CompilerParams(
            dimension_semantics=("parallel", "arbitrary", "arbitrary"),
            vmem_limit_bytes=vmem_limit),
        cost_estimate=pl.CostEstimate(
            flops=4 * b * dp * dp, transcendentals=0,
            bytes_accessed=b * dp * x_isz + w_bytes + 2 * dp * 4 + b * dp * out_isz),
    )(wave_s, x_eff, w_in_p, b_in_p, w_out_p, b_out_p)
    return out_p if d == dp else out_p[:, :d]


# ----------------------------------------------------------------------------
# module wrapper (mirrors the PyTorch module)
# ----------------------------------------------------------------------------
class SimpleWaveNeuronJAX:
    """Stateful oscillation glue in plain JAX (like the PyTorch python-side state);
    the two-Linear + wave-modulation hot path runs inside the Pallas kernel."""

    def __init__(self, dim, key):
        k = jax.random.split(key, 8)
        self.base_freq = jax.random.uniform(k[0], (1,)) * 10.0 + 5.0
        self.carrier_freq = jax.random.uniform(k[1], (1,)) * 200.0 + 100.0
        self.phase = jax.random.uniform(k[2], (1,)) * 2.0 * np.pi
        self.amplitude = jax.random.uniform(k[3], (1,)) * 0.3 + 0.7
        bound = 1.0 / np.sqrt(dim)
        self.w_in = jax.random.uniform(k[4], (dim, dim), minval=-bound, maxval=bound)
        self.b_in = jax.random.uniform(k[5], (dim,), minval=-bound, maxval=bound)
        self.w_out = jax.random.uniform(k[6], (dim, dim), minval=-bound, maxval=bound)
        self.b_out = jax.random.uniform(k[7], (dim,), minval=-bound, maxval=bound)
        (self.w_in_p, self.b_in_p, self.w_out_p, self.b_out_p,
         self.d, self.dp) = prepare_wave_neuron_params(
            self.w_in, self.b_in, self.w_out, self.b_out)
        self.oscillation_state = jnp.zeros((1,), jnp.float32)
        self.last_t = None

    def get_continuous_oscillation(self, t):
        t = jnp.asarray(t, jnp.float32)
        if self.last_t is None:
            self.last_t = t
        dt = t - self.last_t
        self.last_t = t
        self.oscillation_state = self.oscillation_state + dt * self.base_freq
        wave = self.amplitude * jnp.sin(2.0 * np.pi * self.carrier_freq * t + self.phase)
        wave = wave * (1.0 + jnp.sin(2.0 * np.pi * self.oscillation_state))
        return wave  # shape (1,)

    def __call__(self, x, t):
        # TODO(synk): biggest call-site lever — batch many samples/timesteps so the
        # matmul M dim reaches 128 (v5e) / 256 (v6e, v7x); demo shapes stay tiny.
        wave = self.get_continuous_oscillation(t)
        return wave_neuron_forward(x, wave[0], self.w_in_p, self.b_in_p,
                                   self.w_out_p, self.b_out_p, self.d, self.dp)


# ----------------------------------------------------------------------------
# self-test
# ----------------------------------------------------------------------------
if __name__ == "__main__":
    key = jax.random.PRNGKey(0)
    k_model, k_x, k_rest = jax.random.split(key, 3)

    # --- demo shape from the module (exercises the fused fast path) ----------
    B, D = 8, 32
    model = SimpleWaveNeuronJAX(D, k_model)
    x = jax.random.normal(k_x, (B, D), dtype=jnp.float32)
    t = 0.5

    out = jax.block_until_ready(model(x, t))
    assert out.shape == (B, D)

    # recover the exact wave the kernel saw (dt == 0 on the repeat call)
    wave = np.float64(np.asarray(model.get_continuous_oscillation(t))[0])

    def bf16_rt(a):  # emulate bf16 operand rounding, return float64
        return np.asarray(jnp.asarray(a, jnp.float32).astype(jnp.bfloat16)
                          .astype(jnp.float32), np.float64)

    x64 = bf16_rt(x)
    h = x64 @ bf16_rt(np.asarray(model.w_in).T) + np.asarray(model.b_in, np.float64)
    mod = bf16_rt(h * wave)
    ref = mod @ bf16_rt(np.asarray(model.w_out).T) + np.asarray(model.b_out, np.float64)
    np.testing.assert_allclose(np.asarray(out, np.float64), ref, rtol=5e-3, atol=5e-3)

    # also check against the full-precision module math (loose)
    h32 = np.asarray(x, np.float64) @ np.asarray(model.w_in, np.float64).T \
        + np.asarray(model.b_in, np.float64)
    ref_full = (h32 * wave) @ np.asarray(model.w_out, np.float64).T \
        + np.asarray(model.b_out, np.float64)
    np.testing.assert_allclose(np.asarray(out, np.float64), ref_full, rtol=0.0, atol=0.1)

    # --- exercise the general phased path (resident & streamed weights) ------
    B2, D2 = 48, 256
    k_a, k_b, k_c, k_d, k_e = jax.random.split(k_rest, 5)
    bound2 = 1.0 / np.sqrt(D2)
    w_in2 = jax.random.uniform(k_a, (D2, D2), minval=-bound2, maxval=bound2)
    b_in2 = jax.random.uniform(k_b, (D2,), minval=-bound2, maxval=bound2)
    w_out2 = jax.random.uniform(k_c, (D2, D2), minval=-bound2, maxval=bound2)
    b_out2 = jax.random.uniform(k_d, (D2,), minval=-bound2, maxval=bound2)
    x2 = jax.random.normal(k_e, (B2, D2), dtype=jnp.float32)
    wave2 = 1.25
    w_in_p2, b_in_p2, w_out_p2, b_out_p2, d2, dp2 = prepare_wave_neuron_params(
        w_in2, b_in2, w_out2, b_out2)

    x2r = bf16_rt(x2)
    h2 = x2r @ bf16_rt(np.asarray(w_in2).T) + np.asarray(b_in2, np.float64)
    mod2 = bf16_rt(h2 * wave2)
    ref2 = mod2 @ bf16_rt(np.asarray(w_out2).T) + np.asarray(b_out2, np.float64)

    for streamed in (False, True):
        out2 = jax.block_until_ready(
            wave_neuron_forward(x2, wave2, w_in_p2, b_in_p2, w_out_p2, b_out_p2,
                                d2, dp2, _force_general=True,
                                _force_streamed_weights=streamed, _tk=128))
        np.testing.assert_allclose(np.asarray(out2, np.float64), ref2,
                                   rtol=1e-2, atol=1e-2)

    print("KERNEL_OK")
</pallas_src>

<mosaic_0001>
module attributes {stable_mosaic.version = 11 : i64} {
  func.func @kernel(%arg0: i32, %arg1: memref<1x1xf32, #tpu.memory_space<smem>>, %arg2: memref<8x128xbf16, #tpu.memory_space<vmem>>, %arg3: memref<128x128xbf16, #tpu.memory_space<vmem>>, %arg4: memref<1x128xf32, #tpu.memory_space<vmem>>, %arg5: memref<128x128xbf16, #tpu.memory_space<vmem>>, %arg6: memref<1x128xf32, #tpu.memory_space<vmem>>, %arg7: memref<8x128xf32, #tpu.memory_space<vmem>>) attributes {dimension_semantics = [#tpu.dimension_semantics<parallel>], iteration_bounds = array<i64: 1>, scalar_prefetch = 0 : i64, scratch_operands = 0 : i64, tpu.core_type = #tpu.core_type<tc>, window_params = [{transform_indices = @transform_0, window_bounds = array<i64: 1, 1>}, {transform_indices = @transform_1, window_bounds = array<i64: 8, 128>}, {pipeline_mode = #tpu.pipeline_mode<synchronous>, transform_indices = @transform_2, window_bounds = array<i64: 128, 128>}, {pipeline_mode = #tpu.pipeline_mode<synchronous>, transform_indices = @transform_3, window_bounds = array<i64: 1, 128>}, {pipeline_mode = #tpu.pipeline_mode<synchronous>, transform_indices = @transform_4, window_bounds = array<i64: 128, 128>}, {pipeline_mode = #tpu.pipeline_mode<synchronous>, transform_indices = @transform_5, window_bounds = array<i64: 1, 128>}, {transform_indices = @transform_6, window_bounds = array<i64: 8, 128>}]} {
    %c0 = arith.constant 0 : index
    %c0_0 = arith.constant 0 : index
    %0 = vector.load %arg2[%c0, %c0_0] : memref<8x128xbf16, #tpu.memory_space<vmem>>, vector<8x128xbf16>
    %c0_1 = arith.constant 0 : index
    %c0_2 = arith.constant 0 : index
    %1 = vector.load %arg3[%c0_1, %c0_2] : memref<128x128xbf16, #tpu.memory_space<vmem>>, vector<128x128xbf16>
    %cst = arith.constant dense<0.000000e+00> : vector<8x128xf32>
    %2 = tpu.matmul %0, %1, %cst {dimension_numbers = #tpu.dot_dimension_numbers<[1], [0], [0], [1], [0, 0, 1, 1], [], []>} : vector<8x128xbf16>, vector<128x128xbf16>, vector<8x128xf32> -> vector<8x128xf32>
    %c0_3 = arith.constant 0 : index
    %c0_4 = arith.constant 0 : index
    %3 = vector.load %arg4[%c0_3, %c0_4] : memref<1x128xf32, #tpu.memory_space<vmem>>, vector<1x128xf32>
    %4 = vector.broadcast %3 : vector<1x128xf32> to vector<8x128xf32>
    %5 = arith.addf %2, %4 : vector<8x128xf32>
    %c0_5 = arith.constant 0 : index
    %c0_6 = arith.constant 0 : index
    %6 = memref.load %arg1[%c0_5, %c0_6] : memref<1x1xf32, #tpu.memory_space<smem>>
    %7 = vector.broadcast %6 : f32 to vector<8x128xf32>
    %8 = arith.mulf %5, %7 : vector<8x128xf32>
    %9 = arith.truncf %8 : vector<8x128xf32> to vector<8x128xbf16>
    %c0_7 = arith.constant 0 : index
    %c0_8 = arith.constant 0 : index
    %10 = vector.load %arg5[%c0_7, %c0_8] : memref<128x128xbf16, #tpu.memory_space<vmem>>, vector<128x128xbf16>
    %cst_9 = arith.constant dense<0.000000e+00> : vector<8x128xf32>
    %11 = tpu.matmul %9, %10, %cst_9 {dimension_numbers = #tpu.dot_dimension_numbers<[1], [0], [0], [1], [0, 0, 1, 1], [], []>} : vector<8x128xbf16>, vector<128x128xbf16>, vector<8x128xf32> -> vector<8x128xf32>
    %c0_10 = arith.constant 0 : index
    %c0_11 = arith.constant 0 : index
    %12 = vector.load %arg6[%c0_10, %c0_11] : memref<1x128xf32, #tpu.memory_space<vmem>>, vector<1x128xf32>
    %13 = vector.broadcast %12 : vector<1x128xf32> to vector<8x128xf32>
    %14 = arith.addf %11, %13 : vector<8x128xf32>
    %c0_12 = arith.constant 0 : index
    %c0_13 = arith.constant 0 : index
    %15 = vector.load %arg7[%c0_12, %c0_13] : memref<8x128xf32, #tpu.memory_space<vmem>>, vector<8x128xf32>
    tpu.vector_store %arg7[%c0_12, %c0_13], %14 {strides = array<i32>} : memref<8x128xf32, #tpu.memory_space<vmem>>, vector<8x128xf32>,
    return
  }
  func.func @transform_0(%arg0: i32) -> (i32, i32) {
    %c0_i32 = arith.constant 0 : i32
    %c0_i32_0 = arith.constant 0 : i32
    %c0_i32_1 = arith.constant 0 : i32
    return %c0_i32, %c0_i32_0 : i32, i32
  }
  func.func @transform_1(%arg0: i32) -> (i32, i32) {
    %c0_i32 = arith.constant 0 : i32
    %c0_i32_0 = arith.constant 0 : i32
    return %arg0, %c0_i32 : i32, i32
  }
  func.func @transform_2(%arg0: i32) -> (i32, i32) {
    %c0_i32 = arith.constant 0 : i32
    %c0_i32_0 = arith.constant 0 : i32
    %c0_i32_1 = arith.constant 0 : i32
    return %c0_i32, %c0_i32_0 : i32, i32
  }
  func.func @transform_3(%arg0: i32) -> (i32, i32) {
    %c0_i32 = arith.constant 0 : i32
    %c0_i32_0 = arith.constant 0 : i32
    %c0_i32_1 = arith.constant 0 : i32
    return %c0_i32, %c0_i32_0 : i32, i32
  }
  func.func @transform_4(%arg0: i32) -> (i32, i32) {
    %c0_i32 = arith.constant 0 : i32
    %c0_i32_0 = arith.constant 0 : i32
    %c0_i32_1 = arith.constant 0 : i32
    return %c0_i32, %c0_i32_0 : i32, i32
  }
  func.func @transform_5(%arg0: i32) -> (i32, i32) {
    %c0_i32 = arith.constant 0 : i32
    %c0_i32_0 = arith.constant 0 : i32
    %c0_i32_1 = arith.constant 0 : i32
    return %c0_i32, %c0_i32_0 : i32, i32
  }
  func.func @transform_6(%arg0: i32) -> (i32, i32) {
    %c0_i32 = arith.constant 0 : i32
    %c0_i32_0 = arith.constant 0 : i32
    return %arg0, %c0_i32 : i32, i32
  }
}

</mosaic_0001>

<llo_original>
// kernel: tpu_custom_call.1
$region0: #{tpu_custom_call.1}
  #allocation0 [shape = 'u32[]', space=smem, size = 0x4, offset = 0x4, fixed_abs, tag = 'smem constant byte address 0x4 - core index']
  #allocation1 [shape = 'u32[144,128]{1,0:T(1,128)}', space=vmem, size = 0x12000, scoped, tag = 'internal scratch']
  #allocation2 [shape = 'f32[1,1]{1,0:T(1,128)S(6)}', space=smem, size = 0x200, scoped, tag = 'scoped memory for tpu_custom_call.1']
  %s0 = inlined_call_operand.<no memory space> [shape: f32[1,1], index: 0, kind: input, shape index: {}]
  %s1 = inlined_call_operand.hbm [shape: bf16[8,128], index: 1, kind: input, shape index: {}]
  %s2 = inlined_call_operand.hbm [shape: bf16[128,128], index: 2, kind: input, shape index: {}]
  %s3 = inlined_call_operand.vmem [shape: f32[1,128], index: 3, kind: input, shape index: {}]
  %s4 = inlined_call_operand.hbm [shape: bf16[128,128], index: 4, kind: input, shape index: {}]
  %s5 = inlined_call_operand.vmem [shape: f32[1,128], index: 5, kind: input, shape index: {}]
  %s6 = inlined_call_operand.hbm [shape: f32[8,128], index: 6, kind: output, shape index: {}]
  %s7 = sld [smem:[#allocation0]]
  $region46: #{tpu_custom_call.1} parent=0
    _
  %s9 = ssub.s32 1, %s7
  %s10 = scalar_select 0, %s9, %s7
  %11 = sst [smem:[#allocation2]] %s0
  $region1: #{tpu_custom_call.1} parent=0
    #allocation3 [shape = 'u8[2048]{0}', space=vmem, size = 0x800, scoped, tag = 'input window, operand 1, single buffered']
    #allocation4 [shape = 's32[1]{0}', space=sflag, size = 0x4, scoped, tag = 'scoped memory for tpu_custom_call.1']
    #allocation5 [shape = 's32[1]{0}', space=sflag, size = 0x4, scoped, tag = 'scoped memory for tpu_custom_call.1']
    #allocation6 [shape = 'u8[32768]{0}', space=vmem, size = 0x8000, scoped, tag = 'input window, operand 2, single buffered']
    #allocation7 [shape = 's32[1]{0}', space=sflag, size = 0x4, scoped, tag = 'scoped memory for tpu_custom_call.1']
    #allocation8 [shape = 'u8[32768]{0}', space=vmem, size = 0x8000, scoped, tag = 'input window, operand 4, single buffered']
    #allocation9 [shape = 'u8[4096]{0}', space=vmem, size = 0x1000, scoped, tag = 'output window, operand 0, single buffered']
    %12 = vsyncpa [#allocation4], 0
    %13 = vsyncpa [#allocation7], 0
    %14 = vsyncpa [#allocation5], 0
    // Predicated region
    $region2: #{tpu_custom_call.1} parent=1 // pred_check
      _
    $region3: #{tpu_custom_call.1} parent=1 // pred_check_branch
      %16 = sbr.rel (0) target = $region5
    $region4: #{tpu_custom_call.1} parent=1 // pred_region
      _
    $region5: #{tpu_custom_call.1} parent=1 // pred_fallthru
      _
    // Predicated region
    $region6: #{tpu_custom_call.1} parent=1 // pred_check
      _
    $region7: #{tpu_custom_call.1} parent=1 // pred_check_branch
      %18 = sbr.rel (0) target = $region9
    $region8: #{tpu_custom_call.1} parent=1 // pred_region
      %s20 = ssub.s32 64, 64
      %21 = vsyncadd [#allocation4], %s20
      %s23 = sshll.u32 [#allocation3], 4
      %s24 = int_to_ptr.vmem [resolvable:$true] %s23
      %26 = dma.hbm_to_vmem [thread:$0]  %s1, 64, %s24, [#allocation4]
    $region9: #{tpu_custom_call.1} parent=1 // pred_fallthru
      _
    // Predicated region
    $region10: #{tpu_custom_call.1} parent=1 // pred_check
      _
    $region11: #{tpu_custom_call.1} parent=1 // pred_check_branch
      %28 = sbr.rel (0) target = $region13
    $region12: #{tpu_custom_call.1} parent=1 // pred_region
      %s30 = ssub.s32 1024, 1024
      %31 = vsyncadd [#allocation7], %s30
      %s32 = sshll.u32 [#allocation6], 4
      %s33 = int_to_ptr.vmem [resolvable:$true] %s32
      %38 = dma.hbm_to_vmem [thread:$0]  %s2, 1024, %s33, [#allocation7], 64, 64, 4
    $region13: #{tpu_custom_call.1} parent=1 // pred_fallthru
      _
    // Predicated region
    $region14: #{tpu_custom_call.1} parent=1 // pred_check
      _
    $region15: #{tpu_custom_call.1} parent=1 // pred_check_branch
      %40 = sbr.rel (0) target = $region17
    $region16: #{tpu_custom_call.1} parent=1 // pred_region
      _
    $region17: #{tpu_custom_call.1} parent=1 // pred_fallthru
      _
    // Predicated region
    $region18: #{tpu_custom_call.1} parent=1 // pred_check
      _
    $region19: #{tpu_custom_call.1} parent=1 // pred_check_branch
      %42 = sbr.rel (0) target = $region21
    $region20: #{tpu_custom_call.1} parent=1 // pred_region
      %s44 = ssub.s32 1024, 1024
      %45 = vsyncadd [#allocation7], %s44
      %s46 = sshll.u32 [#allocation8], 4
      %s47 = int_to_ptr.vmem [resolvable:$true] %s46
      %52 = dma.hbm_to_vmem [thread:$0]  %s4, 1024, %s47, [#allocation7], 64, 64, 4
    $region21: #{tpu_custom_call.1} parent=1 // pred_fallthru
      _
    // Predicated region
    $region22: #{tpu_custom_call.1} parent=1 // pred_check
      _
    $region23: #{tpu_custom_call.1} parent=1 // pred_check_branch
      %54 = sbr.rel (0) target = $region25
    $region24: #{tpu_custom_call.1} parent=1 // pred_region
      _
    $region25: #{tpu_custom_call.1} parent=1 // pred_fallthru
      _
    // Predicated region
    $region26: #{tpu_custom_call.1} parent=1 // pred_check
      _
    $region27: #{tpu_custom_call.1} parent=1 // pred_check_branch
      %56 = sbr.rel (0) target = $region29
    $region28: #{tpu_custom_call.1} parent=1 // pred_region
      %57 = dma.done [#allocation4], 64
    $region29: #{tpu_custom_call.1} parent=1 // pred_fallthru
      _
    // Predicated region
    $region30: #{tpu_custom_call.1} parent=1 // pred_check
      _
    $region31: #{tpu_custom_call.1} parent=1 // pred_check_branch
      %59 = sbr.rel (0) target = $region33
    $region32: #{tpu_custom_call.1} parent=1 // pred_region
      %60 = dma.done [#allocation7], 1024
    $region33: #{tpu_custom_call.1} parent=1 // pred_fallthru
      _
    // Predicated region
    $region34: #{tpu_custom_call.1} parent=1 // pred_check
      _
    $region35: #{tpu_custom_call.1} parent=1 // pred_check_branch
      %62 = sbr.rel (0) target = $region37
    $region36: #{tpu_custom_call.1} parent=1 // pred_region
      %63 = dma.done [#allocation7], 1024
    $region37: #{tpu_custom_call.1} parent=1 // pred_fallthru
      _
    %v65 = vld [vmem:[#allocation3] sm:$0xf]
    %v66 = vld [vmem:[#allocation6] sm:$0xf]
    %v67 = vld [vmem:[#allocation6 + $0x4] sm:$0xf]
    %v68 = vld [vmem:[#allocation6 + $0x8] sm:$0xf]
    %v69 = vld [vmem:[#allocation6 + $0xc] sm:$0xf]
    %v70 = vld [vmem:[#allocation6 + $0x10] sm:$0xf]
    %v71 = vld [vmem:[#allocation6 + $0x14] sm:$0xf]
    %v72 = vld [vmem:[#allocation6 + $0x18] sm:$0xf]
    %v73 = vld [vmem:[#allocation6 + $0x1c] sm:$0xf]
    %v74 = vld [vmem:[#allocation6 + $0x20] sm:$0xf]
    %v75 = vld [vmem:[#allocation6 + $0x24] sm:$0xf]
    %v76 = vld [vmem:[#allocation6 + $0x28] sm:$0xf]
    %v77 = vld [vmem:[#allocation6 + $0x2c] sm:$0xf]
    %v78 = vld [vmem:[#allocation6 + $0x30] sm:$0xf]
    %v79 = vld [vmem:[#allocation6 + $0x34] sm:$0xf]
    %v80 = vld [vmem:[#allocation6 + $0x38] sm:$0xf]
    %v81 = vld [vmem:[#allocation6 + $0x3c] sm:$0xf]
    %v82 = vld [vmem:[%s3] sm:$0x1]
    %v84 = vlaneseq
    %v85 = vshrl.u32 %v84, 7
    %v86 = vsub.s32 0, %v85
    %v87 = vrot.slane %v82, %v86
    %v105 = vunpack.c.l.b16 %v66
    %v106 = vunpack.c.l.b16 %v67
    %v107 = vunpack.c.l.b16 %v68
    %v108 = vunpack.c.l.b16 %v69
    %v109 = vunpack.c.l.b16 %v70
    %v110 = vunpack.c.l.b16 %v71
    %v111 = vunpack.c.l.b16 %v72
    %v112 = vunpack.c.l.b16 %v73
    %v113 = vunpack.c.l.b16 %v74
    %v114 = vunpack.c.l.b16 %v75
    %v115 = vunpack.c.l.b16 %v76
    %v116 = vunpack.c.l.b16 %v77
    %v117 = vunpack.c.l.b16 %v78
    %v118 = vunpack.c.l.b16 %v79
    %v119 = vunpack.c.l.b16 %v80
    %v120 = vunpack.c.l.b16 %v81
    %v121 = vpack.c.b16 %v106, %v105
    %v122 = vpack.c.b16 %v108, %v107
    %v123 = vpack.c.b16 %v110, %v109
    %v124 = vpack.c.b16 %v112, %v111
    %v125 = vpack.c.b16 %v114, %v113
    %v126 = vpack.c.b16 %v116, %v115
    %v127 = vpack.c.b16 %v118, %v117
    %v128 = vpack.c.b16 %v120, %v119
    %137 = vmatprep.subr.bf16.mxu0 0
    %138 = vmatpush1.bf16.msra.mxu0 %v128
    %139 = vmatprep.subr.bf16.mxu0 0
    %140 = vmatpush1.bf16.msra.mxu0 %v127
    %141 = vmatprep.subr.bf16.mxu0 0
    %142 = vmatpush1.bf16.msra.mxu0 %v126
    %143 = vmatprep.subr.bf16.mxu0 0
    %144 = vmatpush1.bf16.msra.mxu0 %v125
    %145 = vmatprep.subr.bf16.mxu0 0
    %146 = vmatpush1.bf16.msra.mxu0 %v124
    %147 = vmatprep.subr.bf16.mxu0 0
    %148 = vmatpush1.bf16.msra.mxu0 %v123
    %149 = vmatprep.subr.bf16.mxu0 0
    %150 = vmatpush1.bf16.msra.mxu0 %v122
    %151 = vmatprep.subr.bf16.mxu0 0
    %152 = vmatpush1.bf16.msra.mxu0 %v121
    %153 = vmatprep.subr.bf16.mxu0 0
    %154 = vmatpush2.bf16.msra.mxu0 0
    %155 = vmatprep.subr.bf16.mxu0 0
    %156 = vmatpush2.bf16.msra.mxu0 0
    %157 = vmatprep.subr.bf16.mxu0 0
    %158 = vmatpush2.bf16.msra.mxu0 0
    %159 = vmatprep.subr.bf16.mxu0 0
    %160 = vmatpush2.bf16.msra.mxu0 0
    %161 = vmatprep.subr.bf16.mxu0 0
    %162 = vmatpush2.bf16.msra.mxu0 0
    %163 = vmatprep.subr.bf16.mxu0 0
    %164 = vmatpush2.bf16.msra.mxu0 0
    %165 = vmatprep.subr.bf16.mxu0 0
    %166 = vmatpush2.bf16.msra.mxu0 0
    %167 = vmatprep.subr.bf16.mxu0 0
    %168 = vmatpush2.bf16.msra.mxu0 0
    %169 = vmatprep.mubr.bf16.mxu0 0
    %170 = vmatmul.mubr.bf16.gmra.mxu0 %v65
    %v171 = vpop.f32.mrf.mxu0
    %v172 = vadd.f32 %v87, %v171
    %v173 = vpop.f32.mrf.mxu0
    %v174 = vpop.f32.mrf.mxu0
    %v175 = vpop.f32.mrf.mxu0
    %176 = vdwg.mxu0
    %s177 = sld [smem:[#allocation2]]
    %v178 = vstv %s177
    %v179 = vmul.f32 %v172, %v178
    %v180 = vpack.c.bf16 %v179, %v179
    %v181 = vld [vmem:[#allocation8] sm:$0xf]
    %v182 = vld [vmem:[#allocation8 + $0x4] sm:$0xf]
    %v183 = vld [vmem:[#allocation8 + $0x8] sm:$0xf]
    %v184 = vld [vmem:[#allocation8 + $0xc] sm:$0xf]
    %v185 = vld [vmem:[#allocation8 + $0x10] sm:$0xf]
    %v186 = vld [vmem:[#allocation8 + $0x14] sm:$0xf]
    %v187 = vld [vmem:[#allocation8 + $0x18] sm:$0xf]
    %v188 = vld [vmem:[#allocation8 + $0x1c] sm:$0xf]
    %v189 = vld [vmem:[#allocation8 + $0x20] sm:$0xf]
    %v190 = vld [vmem:[#allocation8 + $0x24] sm:$0xf]
    %v191 = vld [vmem:[#allocation8 + $0x28] sm:$0xf]
    %v192 = vld [vmem:[#allocation8 + $0x2c] sm:$0xf]
    %v193 = vld [vmem:[#allocation8 + $0x30] sm:$0xf]
    %v194 = vld [vmem:[#allocation8 + $0x34] sm:$0xf]
    %v195 = vld [vmem:[#allocation8 + $0x38] sm:$0xf]
    %v196 = vld [vmem:[#allocation8 + $0x3c] sm:$0xf]
    %v197 = vld [vmem:[%s5] sm:$0x1]
    %v199 = vlaneseq
    %v200 = vshrl.u32 %v199, 7
    %v201 = vsub.s32 0, %v200
    %v202 = vrot.slane %v197, %v201
    %v220 = vunpack.c.l.b16 %v181
    %v221 = vunpack.c.l.b16 %v182
    %v222 = vunpack.c.l.b16 %v183
    %v223 = vunpack.c.l.b16 %v184
    %v224 = vunpack.c.l.b16 %v185
    %v225 = vunpack.c.l.b16 %v186
    %v226 = vunpack.c.l.b16 %v187
    %v227 = vunpack.c.l.b16 %v188
    %v228 = vunpack.c.l.b16 %v189
    %v229 = vunpack.c.l.b16 %v190
    %v230 = vunpack.c.l.b16 %v191
    %v231 = vunpack.c.l.b16 %v192
    %v232 = vunpack.c.l.b16 %v193
    %v233 = vunpack.c.l.b16 %v194
    %v234 = vunpack.c.l.b16 %v195
    %v235 = vunpack.c.l.b16 %v196
    %v236 = vpack.c.b16 %v221, %v220
    %v237 = vpack.c.b16 %v223, %v222
    %v238 = vpack.c.b16 %v225, %v224
    %v239 = vpack.c.b16 %v227, %v226
    %v240 = vpack.c.b16 %v229, %v228
    %v241 = vpack.c.b16 %v231, %v230
    %v242 = vpack.c.b16 %v233, %v232
    %v243 = vpack.c.b16 %v235, %v234
    %252 = vmatprep.subr.bf16.mxu0 0
    %253 = vmatpush1.bf16.msra.mxu0 %v243
    %254 = vmatprep.subr.bf16.mxu0 0
    %255 = vmatpush1.bf16.msra.mxu0 %v242
    %256 = vmatprep.subr.bf16.mxu0 0
    %257 = vmatpush1.bf16.msra.mxu0 %v241
    %258 = vmatprep.subr.bf16.mxu0 0
    %259 = vmatpush1.bf16.msra.mxu0 %v240
    %260 = vmatprep.subr.bf16.mxu0 0
    %261 = vmatpush1.bf16.msra.mxu0 %v239
    %262 = vmatprep.subr.bf16.mxu0 0
    %263 = vmatpush1.bf16.msra.mxu0 %v238
    %264 = vmatprep.subr.bf16.mxu0 0
    %265 = vmatpush1.bf16.msra.mxu0 %v237
    %266 = vmatprep.subr.bf16.mxu0 0
    %267 = vmatpush1.bf16.msra.mxu0 %v236
    %268 = vmatprep.subr.bf16.mxu0 0
    %269 = vmatpush2.bf16.msra.mxu0 0
    %270 = vmatprep.subr.bf16.mxu0 0
    %271 = vmatpush2.bf16.msra.mxu0 0
    %272 = vmatprep.subr.bf16.mxu0 0
    %273 = vmatpush2.bf16.msra.mxu0 0
    %274 = vmatprep.subr.bf16.mxu0 0
    %275 = vmatpush2.bf16.msra.mxu0 0
    %276 = vmatprep.subr.bf16.mxu0 0
    %277 = vmatpush2.bf16.msra.mxu0 0
    %278 = vmatprep.subr.bf16.mxu0 0
    %279 = vmatpush2.bf16.msra.mxu0 0
    %280 = vmatprep.subr.bf16.mxu0 0
    %281 = vmatpush2.bf16.msra.mxu0 0
    %282 = vmatprep.subr.bf16.mxu0 0
    %283 = vmatpush2.bf16.msra.mxu0 0
    %284 = vmatprep.mubr.bf16.mxu0 0
    %285 = vmatmul.mubr.bf16.gmra.mxu0 %v180
    %v286 = vpop.f32.mrf.mxu0
    %v287 = vadd.f32 %v202, %v286
    %v288 = vpop.f32.mrf.mxu0
    %v289 = vpop.f32.mrf.mxu0
    %v290 = vpop.f32.mrf.mxu0
    %291 = vdwg.mxu0
    %292 = vst [vmem:[#allocation9] sm:$0xff] %v287
    // Predicated region
    $region38: #{tpu_custom_call.1} parent=1 // pred_check
      _
    $region39: #{tpu_custom_call.1} parent=1 // pred_check_branch
      %294 = sbr.rel (0) target = $region41
    $region40: #{tpu_custom_call.1} parent=1 // pred_region
      %s296 = ssub.s32 128, 128
      %297 = vsyncadd [#allocation5], %s296
      %s299 = sshll.u32 [#allocation9], 4
      %s300 = int_to_ptr.vmem [resolvable:$true] %s299
      %302 = dma.vmem_to_hbm [thread:$0]  %s300, 128, %s6, [#allocation5]
    $region41: #{tpu_custom_call.1} parent=1 // pred_fallthru
      _
    // Predicated region
    $region42: #{tpu_custom_call.1} parent=1 // pred_check
      _
    $region43: #{tpu_custom_call.1} parent=1 // pred_check_branch
      %304 = sbr.rel (0) target = $region45
    $region44: #{tpu_custom_call.1} parent=1 // pred_region
      %305 = dma.done [#allocation5], 128
    $region45: #{tpu_custom_call.1} parent=1 // pred_fallthru
      _
    %306 = vsyncpa [#allocation4], 1
    %307 = vsyncpa [#allocation7], 1
    %308 = vsyncpa [#allocation5], 1

</llo_original>
